<compile_context>
chip_gen: v6e
topology: v6e:2x2x1
jax: 0.10.0
libtpu: 0.0.40
codegen_flags: <defaults>
</compile_context>

<pallas_src>
import jax
import jax.numpy as jnp
from jax.experimental import pallas as pl
from jax.experimental.pallas import tpu as pltpu

# Stand-ins for EntityManager (synthetic, deterministic).
CARDS_COUNT = 10
WONDERS_COUNT = 4
NUM_CARD_SLOTS = 6  # .flatten(1) implies 6 card slots per batch element


def _round_up(x, m):
    return (x + m - 1) // m * m


def _fused_kernel(feat_ref, cards_ref,
                  w1p_ref, w2p_ref, b12_ref,
                  w34_ref, b34_ref,
                  out_ref):
    # Layer 1 (linear1 + 6x linear2 + implicit concat), bf16 MXU / f32 acc.
    feat = feat_ref[...].astype(jnp.bfloat16)
    cards = cards_ref[...].astype(jnp.bfloat16)
    h = jnp.dot(feat, w1p_ref[...], preferred_element_type=jnp.float32)
    h = h + jnp.dot(cards, w2p_ref[...], preferred_element_type=jnp.float32)
    h = jnp.maximum(h + b12_ref[...], 0.0)                    # f32 bias + relu

    # Layer 2 (linear3 | linear4 fused): lane-dense 128-wide output slab.
    hb = h.astype(jnp.bfloat16)
    out = jnp.dot(hb, w34_ref[...], preferred_element_type=jnp.float32)
    out_ref[...] = (out + b34_ref[...]).astype(out_ref.dtype)


def pack_params(params, n_slots=NUM_CARD_SLOTS):
    """One-time packing of the 4 Linear layers into 3 fused weight blocks.

    Call ONCE outside the per-step forward; the packed tensors are tiny
    (~100 KiB) and stay resident in VMEM across all grid steps.
    """
    w1, b1, w2, b2, w3, b3, w4, b4 = params
    GH, GF = w1.shape
    CH, CF = w2.shape
    P = w3.shape[0]

    H = GH + n_slots * CH
    H_pad = _round_up(H, 128)
    NP = P + 2
    NP_pad = _round_up(NP, 128)

    f32, bf16 = jnp.float32, jnp.bfloat16
    # linear1: w1.T into columns [0:GH].
    w1p = jnp.zeros((GF, H_pad), bf16).at[:, :GH].set(w1.T.astype(bf16))
    # linear2 on all 6 slots as ONE block-diagonal matmul; column placement
    # also realizes torch.cat((features, cards), dim=1).
    w2p = jnp.zeros((n_slots * CF, H_pad), bf16)
    for j in range(n_slots):
        w2p = w2p.at[j * CF:(j + 1) * CF,
                     GH + j * CH: GH + (j + 1) * CH].set(w2.T.astype(bf16))
    b12 = (jnp.zeros((1, H_pad), f32)
           .at[0, :GH].set(b1.astype(f32))
           .at[0, GH:H].set(jnp.tile(b2.astype(f32), n_slots)))
    # linear3 | linear4 fused along output dim: policy cols [0:P], value [P:P+2].
    w34 = (jnp.zeros((H_pad, NP_pad), bf16)
           .at[:H, :P].set(w3.T.astype(bf16))
           .at[:H, P:P + 2].set(w4.T.astype(bf16)))
    b34 = (jnp.zeros((1, NP_pad), f32)
           .at[0, :P].set(b3.astype(f32))
           .at[0, P:P + 2].set(b4.astype(f32)))
    return (w1p, w2p, b12, w34, b34)


def baseline_embeddings(features, cards, packed, n_policy, *,
                        tb=2048, out_dtype=jnp.float32):
    """Pallas-fused forward of TorchBaselineEmbeddings.

    features : (B, GF) f32
    cards    : (B, 6, CF) f32
    packed   : result of pack_params(params)  (precomputed once)
    n_policy : static int, number of policy logits
    returns  : policy (B, n_policy), value (B, 2)
    """
    w1p, w2p, b12, w34, b34 = packed
    B, GF = features.shape
    _, n_slots, CF = cards.shape
    CFT = n_slots * CF
    H_pad = w1p.shape[1]
    NP_pad = w34.shape[1]
    P = n_policy

    # (B, 6, CF) -> (B, 6*CF): free row-major collapse, no data movement.
    cards_flat = cards.reshape(B, CFT)

    # Batch tile: as large as possible (per-step overhead amortization; the
    # kernel is HBM-bound), but keep >=4 grid steps on big batches so the
    # "parallel" axis can balance across v7x's two TensorCores.
    if B <= 8:
        TB = B                                    # full-extent block, grid of 1
    else:
        TB = min(tb, _round_up(B, 8))
        if B >= 4 * 512:
            TB = min(TB, _round_up(pl.cdiv(B, 4), 8))

    grid = (pl.cdiv(B, TB),)                      # edge block masked; no jnp.pad

    out = pl.pallas_call(
        _fused_kernel,
        grid=grid,
        in_specs=[
            pl.BlockSpec((TB, GF), lambda i: (i, 0)),          # features tile
            pl.BlockSpec((TB, CFT), lambda i: (i, 0)),         # cards tile
            pl.BlockSpec((GF, H_pad), lambda i: (0, 0)),       # W1p  (resident)
            pl.BlockSpec((CFT, H_pad), lambda i: (0, 0)),      # W2p  (resident)
            pl.BlockSpec((1, H_pad), lambda i: (0, 0)),        # b12  (resident)
            pl.BlockSpec((H_pad, NP_pad), lambda i: (0, 0)),   # W34p (resident)
            pl.BlockSpec((1, NP_pad), lambda i: (0, 0)),       # b34  (resident)
        ],
        out_specs=pl.BlockSpec((TB, NP_pad), lambda i: (i, 0)),
        out_shape=jax.ShapeDtypeStruct((B, NP_pad), out_dtype),
        compiler_params=pltpu.CompilerParams(
            dimension_semantics=("parallel",)),
    )(features, cards_flat, w1p, w2p, b12, w34, b34)

    # Single narrow slice of the lane-dense slab, then a cheap split.
    head = out[:, :P + 2]
    return head[:, :P], head[:, P:]


def init_params(key, game_feats, card_feats, gh, ch):
    """Deterministic PyTorch-Linear-style init (uniform +/- 1/sqrt(fan_in))."""
    hidden = gh + ch * NUM_CARD_SLOTS
    p_out = CARDS_COUNT * 2 + WONDERS_COUNT

    def linear(k, out_f, in_f):
        kw, kb = jax.random.split(k)
        bound = 1.0 / jnp.sqrt(jnp.float32(in_f))
        w = jax.random.uniform(kw, (out_f, in_f), jnp.float32, -bound, bound)
        b = jax.random.uniform(kb, (out_f,), jnp.float32, -bound, bound)
        return w, b

    k1, k2, k3, k4 = jax.random.split(key, 4)
    w1, b1 = linear(k1, gh, game_feats)
    w2, b2 = linear(k2, ch, card_feats)
    w3, b3 = linear(k3, p_out, hidden)
    w4, b4 = linear(k4, 2, hidden)
    return (w1, b1, w2, b2, w3, b3, w4, b4)


def reference_forward(features, cards, params):
    """Plain-JAX f32 reference mirroring the PyTorch module."""
    w1, b1, w2, b2, w3, b3, w4, b4 = params
    f = jax.nn.relu(features @ w1.T + b1)
    c = jax.nn.relu(cards @ w2.T + b2)           # (B, 6, CH)
    c = c.reshape(c.shape[0], -1)                # flatten(1)
    x = jnp.concatenate([f, c], axis=1)
    return x @ w3.T + b3, x @ w4.T + b4


if __name__ == "__main__":
    B = 4
    GAME_FEATS = 16
    CARD_FEATS = 12
    GAME_HIDDEN = 32
    CARD_HIDDEN = 16
    P_OUT = CARDS_COUNT * 2 + WONDERS_COUNT

    key = jax.random.PRNGKey(0)
    kf, kc, kp = jax.random.split(key, 3)
    features = jax.random.normal(kf, (B, GAME_FEATS), jnp.float32)
    cards = jax.random.normal(kc, (B, NUM_CARD_SLOTS, CARD_FEATS), jnp.float32)
    params = init_params(kp, GAME_FEATS, CARD_FEATS, GAME_HIDDEN, CARD_HIDDEN)

    packed = pack_params(params)                 # hoisted: packed ONCE
    fwd = jax.jit(lambda f, c: baseline_embeddings(f, c, packed, P_OUT))

    policy, value = fwd(features, cards)
    jax.block_until_ready((policy, value))

    ref_policy, ref_value = reference_forward(features, cards, params)
    assert policy.shape == ref_policy.shape and value.shape == ref_value.shape
    # bf16 MXU operands -> slightly looser tolerance than the pure-f32 version.
    assert jnp.allclose(policy, ref_policy, atol=2e-2, rtol=2e-2)
    assert jnp.allclose(value, ref_value, atol=2e-2, rtol=2e-2)

    print("KERNEL_OK")
</pallas_src>

<mosaic_0001>
module attributes {stable_mosaic.version = 11 : i64} {
  func.func @_fused_kernel(%arg0: i32, %arg1: memref<4x16xf32, #tpu.memory_space<vmem>>, %arg2: memref<4x72xf32, #tpu.memory_space<vmem>>, %arg3: memref<16x128xbf16, #tpu.memory_space<vmem>>, %arg4: memref<72x128xbf16, #tpu.memory_space<vmem>>, %arg5: memref<1x128xf32, #tpu.memory_space<vmem>>, %arg6: memref<128x128xbf16, #tpu.memory_space<vmem>>, %arg7: memref<1x128xf32, #tpu.memory_space<vmem>>, %arg8: memref<4x128xf32, #tpu.memory_space<vmem>>) attributes {dimension_semantics = [#tpu.dimension_semantics<parallel>], iteration_bounds = array<i64: 1>, scalar_prefetch = 0 : i64, scratch_operands = 0 : i64, tpu.core_type = #tpu.core_type<tc>, window_params = [{transform_indices = @transform_0, window_bounds = array<i64: 4, 16>}, {transform_indices = @transform_1, window_bounds = array<i64: 4, 72>}, {pipeline_mode = #tpu.pipeline_mode<synchronous>, transform_indices = @transform_2, window_bounds = array<i64: 16, 128>}, {pipeline_mode = #tpu.pipeline_mode<synchronous>, transform_indices = @transform_3, window_bounds = array<i64: 72, 128>}, {pipeline_mode = #tpu.pipeline_mode<synchronous>, transform_indices = @transform_4, window_bounds = array<i64: 1, 128>}, {pipeline_mode = #tpu.pipeline_mode<synchronous>, transform_indices = @transform_5, window_bounds = array<i64: 128, 128>}, {pipeline_mode = #tpu.pipeline_mode<synchronous>, transform_indices = @transform_6, window_bounds = array<i64: 1, 128>}, {transform_indices = @transform_7, window_bounds = array<i64: 4, 128>}]} {
    %c0 = arith.constant 0 : index
    %c0_0 = arith.constant 0 : index
    %0 = vector.load %arg1[%c0, %c0_0] : memref<4x16xf32, #tpu.memory_space<vmem>>, vector<4x16xf32>
    %1 = arith.truncf %0 : vector<4x16xf32> to vector<4x16xbf16>
    %c0_1 = arith.constant 0 : index
    %c0_2 = arith.constant 0 : index
    %2 = vector.load %arg2[%c0_1, %c0_2] : memref<4x72xf32, #tpu.memory_space<vmem>>, vector<4x72xf32>
    %3 = arith.truncf %2 : vector<4x72xf32> to vector<4x72xbf16>
    %c0_3 = arith.constant 0 : index
    %c0_4 = arith.constant 0 : index
    %4 = vector.load %arg3[%c0_3, %c0_4] : memref<16x128xbf16, #tpu.memory_space<vmem>>, vector<16x128xbf16>
    %cst = arith.constant dense<0.000000e+00> : vector<4x128xf32>
    %5 = tpu.matmul %1, %4, %cst {dimension_numbers = #tpu.dot_dimension_numbers<[1], [0], [0], [1], [0, 0, 1, 1], [], []>} : vector<4x16xbf16>, vector<16x128xbf16>, vector<4x128xf32> -> vector<4x128xf32>
    %c0_5 = arith.constant 0 : index
    %c0_6 = arith.constant 0 : index
    %6 = vector.load %arg4[%c0_5, %c0_6] : memref<72x128xbf16, #tpu.memory_space<vmem>>, vector<72x128xbf16>
    %cst_7 = arith.constant dense<0.000000e+00> : vector<4x128xf32>
    %7 = tpu.matmul %3, %6, %cst_7 {dimension_numbers = #tpu.dot_dimension_numbers<[1], [0], [0], [1], [0, 0, 1, 1], [], []>} : vector<4x72xbf16>, vector<72x128xbf16>, vector<4x128xf32> -> vector<4x128xf32>
    %8 = arith.addf %5, %7 : vector<4x128xf32>
    %c0_8 = arith.constant 0 : index
    %c0_9 = arith.constant 0 : index
    %9 = vector.load %arg5[%c0_8, %c0_9] : memref<1x128xf32, #tpu.memory_space<vmem>>, vector<1x128xf32>
    %10 = vector.broadcast %9 : vector<1x128xf32> to vector<4x128xf32>
    %11 = arith.addf %8, %10 : vector<4x128xf32>
    %cst_10 = arith.constant 0.000000e+00 : f32
    %12 = vector.broadcast %cst_10 : f32 to vector<4x128xf32>
    %13 = arith.maximumf %11, %12 : vector<4x128xf32>
    %14 = arith.truncf %13 : vector<4x128xf32> to vector<4x128xbf16>
    %c0_11 = arith.constant 0 : index
    %c0_12 = arith.constant 0 : index
    %15 = vector.load %arg6[%c0_11, %c0_12] : memref<128x128xbf16, #tpu.memory_space<vmem>>, vector<128x128xbf16>
    %cst_13 = arith.constant dense<0.000000e+00> : vector<4x128xf32>
    %16 = tpu.matmul %14, %15, %cst_13 {dimension_numbers = #tpu.dot_dimension_numbers<[1], [0], [0], [1], [0, 0, 1, 1], [], []>} : vector<4x128xbf16>, vector<128x128xbf16>, vector<4x128xf32> -> vector<4x128xf32>
    %c0_14 = arith.constant 0 : index
    %c0_15 = arith.constant 0 : index
    %17 = vector.load %arg7[%c0_14, %c0_15] : memref<1x128xf32, #tpu.memory_space<vmem>>, vector<1x128xf32>
    %18 = vector.broadcast %17 : vector<1x128xf32> to vector<4x128xf32>
    %19 = arith.addf %16, %18 : vector<4x128xf32>
    %c0_16 = arith.constant 0 : index
    %c0_17 = arith.constant 0 : index
    %20 = vector.load %arg8[%c0_16, %c0_17] : memref<4x128xf32, #tpu.memory_space<vmem>>, vector<4x128xf32>
    tpu.vector_store %arg8[%c0_16, %c0_17], %19 {strides = array<i32>} : memref<4x128xf32, #tpu.memory_space<vmem>>, vector<4x128xf32>,
    return
  }
  func.func @transform_0(%arg0: i32) -> (i32, i32) {
    %c0_i32 = arith.constant 0 : i32
    %c0_i32_0 = arith.constant 0 : i32
    return %arg0, %c0_i32 : i32, i32
  }
  func.func @transform_1(%arg0: i32) -> (i32, i32) {
    %c0_i32 = arith.constant 0 : i32
    %c0_i32_0 = arith.constant 0 : i32
    return %arg0, %c0_i32 : i32, i32
  }
  func.func @transform_2(%arg0: i32) -> (i32, i32) {
    %c0_i32 = arith.constant 0 : i32
    %c0_i32_0 = arith.constant 0 : i32
    %c0_i32_1 = arith.constant 0 : i32
    return %c0_i32, %c0_i32_0 : i32, i32
  }
  func.func @transform_3(%arg0: i32) -> (i32, i32) {
    %c0_i32 = arith.constant 0 : i32
    %c0_i32_0 = arith.constant 0 : i32
    %c0_i32_1 = arith.constant 0 : i32
    return %c0_i32, %c0_i32_0 : i32, i32
  }
  func.func @transform_4(%arg0: i32) -> (i32, i32) {
    %c0_i32 = arith.constant 0 : i32
    %c0_i32_0 = arith.constant 0 : i32
    %c0_i32_1 = arith.constant 0 : i32
    return %c0_i32, %c0_i32_0 : i32, i32
  }
  func.func @transform_5(%arg0: i32) -> (i32, i32) {
    %c0_i32 = arith.constant 0 : i32
    %c0_i32_0 = arith.constant 0 : i32
    %c0_i32_1 = arith.constant 0 : i32
    return %c0_i32, %c0_i32_0 : i32, i32
  }
  func.func @transform_6(%arg0: i32) -> (i32, i32) {
    %c0_i32 = arith.constant 0 : i32
    %c0_i32_0 = arith.constant 0 : i32
    %c0_i32_1 = arith.constant 0 : i32
    return %c0_i32, %c0_i32_0 : i32, i32
  }
  func.func @transform_7(%arg0: i32) -> (i32, i32) {
    %c0_i32 = arith.constant 0 : i32
    %c0_i32_0 = arith.constant 0 : i32
    return %arg0, %c0_i32 : i32, i32
  }
}

</mosaic_0001>

<llo_original>
// kernel: _lambda_.1
$region0: #{_lambda_.1}
  #allocation0 [shape = 'u32[]', space=smem, size = 0x4, offset = 0x4, fixed_abs, tag = 'smem constant byte address 0x4 - core index']
  #allocation1 [shape = 'u32[144,128]{1,0:T(1,128)}', space=vmem, size = 0x12000, scoped, tag = 'internal scratch']
  %s0 = inlined_call_operand.hbm [shape: f32[4,16], index: 0, kind: input, shape index: {}]
  %s1 = inlined_call_operand.vmem [shape: f32[4,72], index: 1, kind: input, shape index: {}]
  %s2 = inlined_call_operand.hbm [shape: bf16[16,128], index: 2, kind: input, shape index: {}]
  %s3 = inlined_call_operand.vmem [shape: bf16[72,128], index: 3, kind: input, shape index: {}]
  %s4 = inlined_call_operand.hbm [shape: f32[1,128], index: 4, kind: input, shape index: {}]
  %s5 = inlined_call_operand.vmem [shape: bf16[128,128], index: 5, kind: input, shape index: {}]
  %s6 = inlined_call_operand.vmem [shape: f32[1,128], index: 6, kind: input, shape index: {}]
  %s7 = inlined_call_operand.vmem [shape: f32[4,128], index: 7, kind: output, shape index: {}]
  %s8 = sld [smem:[#allocation0]]
  $region50: #{_lambda_.1} parent=0
    _
  %s10 = ssub.s32 1, %s8
  %s11 = scalar_select 0, %s10, %s8
  $region1: #{_lambda_.1} parent=0
    #allocation2 [shape = 'u8[2048]{0}', space=vmem, size = 0x800, scoped, tag = 'input window, operand 0, single buffered']
    #allocation3 [shape = 's32[1]{0}', space=sflag, size = 0x4, scoped, tag = 'scoped memory for _lambda_.1']
    #allocation4 [shape = 'u8[4096]{0}', space=vmem, size = 0x1000, scoped, tag = 'input window, operand 2, single buffered']
    #allocation5 [shape = 's32[1]{0}', space=sflag, size = 0x4, scoped, tag = 'scoped memory for _lambda_.1']
    #allocation6 [shape = 'u8[512]{0}', space=vmem, size = 0x400, scoped, tag = 'input window, operand 4, single buffered']
    %12 = vsyncpa [#allocation3], 0
    %13 = vsyncpa [#allocation5], 0
    // Predicated region
    $region2: #{_lambda_.1} parent=1 // pred_check
      _
    $region3: #{_lambda_.1} parent=1 // pred_check_branch
      %15 = sbr.rel (0) target = $region5
    $region4: #{_lambda_.1} parent=1 // pred_region
      %s17 = ssub.s32 64, 64
      %18 = vsyncadd [#allocation3], %s17
      %s20 = sshll.u32 [#allocation2], 4
      %s21 = int_to_ptr.vmem [resolvable:$true] %s20
      %23 = dma.hbm_to_vmem [thread:$0]  %s0, 64, %s21, [#allocation3]
    $region5: #{_lambda_.1} parent=1 // pred_fallthru
      _
    // Predicated region
    $region6: #{_lambda_.1} parent=1 // pred_check
      _
    $region7: #{_lambda_.1} parent=1 // pred_check_branch
      %25 = sbr.rel (0) target = $region9
    $region8: #{_lambda_.1} parent=1 // pred_region
      _
    $region9: #{_lambda_.1} parent=1 // pred_fallthru
      _
    // Predicated region
    $region10: #{_lambda_.1} parent=1 // pred_check
      _
    $region11: #{_lambda_.1} parent=1 // pred_check_branch
      %27 = sbr.rel (0) target = $region13
    $region12: #{_lambda_.1} parent=1 // pred_region
      %s29 = ssub.s32 128, 128
      %30 = vsyncadd [#allocation5], %s29
      %s31 = sshll.u32 [#allocation4], 4
      %s32 = int_to_ptr.vmem [resolvable:$true] %s31
      %37 = dma.hbm_to_vmem [thread:$0]  %s2, 128, %s32, [#allocation5], 64, 64, 4
    $region13: #{_lambda_.1} parent=1 // pred_fallthru
      _
    // Predicated region
    $region14: #{_lambda_.1} parent=1 // pred_check
      _
    $region15: #{_lambda_.1} parent=1 // pred_check_branch
      %39 = sbr.rel (0) target = $region17
    $region16: #{_lambda_.1} parent=1 // pred_region
      _
    $region17: #{_lambda_.1} parent=1 // pred_fallthru
      _
    // Predicated region
    $region18: #{_lambda_.1} parent=1 // pred_check
      _
    $region19: #{_lambda_.1} parent=1 // pred_check_branch
      %41 = sbr.rel (0) target = $region21
    $region20: #{_lambda_.1} parent=1 // pred_region
      %s43 = ssub.s32 16, 16
      %44 = vsyncadd [#allocation5], %s43
      %s46 = sshll.u32 [#allocation6], 4
      %s47 = int_to_ptr.vmem [resolvable:$true] %s46
      %49 = dma.hbm_to_vmem [thread:$0]  %s4, 16, %s47, [#allocation5]
    $region21: #{_lambda_.1} parent=1 // pred_fallthru
      _
    // Predicated region
    $region22: #{_lambda_.1} parent=1 // pred_check
      _
    $region23: #{_lambda_.1} parent=1 // pred_check_branch
      %51 = sbr.rel (0) target = $region25
    $region24: #{_lambda_.1} parent=1 // pred_region
      _
    $region25: #{_lambda_.1} parent=1 // pred_fallthru
      _
    // Predicated region
    $region26: #{_lambda_.1} parent=1 // pred_check
      _
    $region27: #{_lambda_.1} parent=1 // pred_check_branch
      %53 = sbr.rel (0) target = $region29
    $region28: #{_lambda_.1} parent=1 // pred_region
      _
    $region29: #{_lambda_.1} parent=1 // pred_fallthru
      _
    // Predicated region
    $region30: #{_lambda_.1} parent=1 // pred_check
      _
    $region31: #{_lambda_.1} parent=1 // pred_check_branch
      %55 = sbr.rel (0) target = $region33
    $region32: #{_lambda_.1} parent=1 // pred_region
      %56 = dma.done [#allocation3], 64
    $region33: #{_lambda_.1} parent=1 // pred_fallthru
      _
    // Predicated region
    $region34: #{_lambda_.1} parent=1 // pred_check
      _
    $region35: #{_lambda_.1} parent=1 // pred_check_branch
      %58 = sbr.rel (0) target = $region37
    $region36: #{_lambda_.1} parent=1 // pred_region
      %59 = dma.done [#allocation5], 128
    $region37: #{_lambda_.1} parent=1 // pred_fallthru
      _
    // Predicated region
    $region38: #{_lambda_.1} parent=1 // pred_check
      _
    $region39: #{_lambda_.1} parent=1 // pred_check_branch
      %61 = sbr.rel (0) target = $region41
    $region40: #{_lambda_.1} parent=1 // pred_region
      %62 = dma.done [#allocation5], 16
    $region41: #{_lambda_.1} parent=1 // pred_fallthru
      _
    %v64 = vld [vmem:[#allocation2] sm:$0xf]
    %v65 = vpack.c.bf16 %v64, %v64
    %v66 = vld [vmem:[%s1] sm:$0xf]
    %v67 = vpack.c.bf16 %v66, %v66
    %v68 = vld [vmem:[#allocation4] sm:$0xf]
    %v69 = vld [vmem:[#allocation4 + $0x4] sm:$0xf]
    %v70 = vld [vmem:[%s3] sm:$0xf]
    %v71 = vld [vmem:[%s3 + $0x4] sm:$0xf]
    %v72 = vld [vmem:[%s3 + $0x8] sm:$0xf]
    %v73 = vld [vmem:[%s3 + $0xc] sm:$0xf]
    %v74 = vld [vmem:[%s3 + $0x10] sm:$0xf]
    %v75 = vld [vmem:[%s3 + $0x14] sm:$0xf]
    %v76 = vld [vmem:[%s3 + $0x18] sm:$0xf]
    %v77 = vld [vmem:[%s3 + $0x1c] sm:$0xf]
    %v78 = vld [vmem:[%s3 + $0x20] sm:$0xf]
    %v88 = vunpack.c.l.b16 %v70
    %v89 = vunpack.c.l.b16 %v71
    %v90 = vunpack.c.l.b16 %v72
    %v91 = vunpack.c.l.b16 %v73
    %v92 = vunpack.c.l.b16 %v74
    %v93 = vunpack.c.l.b16 %v75
    %v94 = vunpack.c.l.b16 %v76
    %v95 = vunpack.c.l.b16 %v77
    %v96 = vunpack.c.l.b16 %v78
    %v97 = vpack.c.b16 %v89, %v88
    %v98 = vpack.c.b16 %v91, %v90
    %v99 = vpack.c.b16 %v93, %v92
    %v100 = vpack.c.b16 %v95, %v94
    %v101 = vpack.c.b16 %v96, %v96
    %vm106 = vcmask 588800
    %v108 = vsel %vm106, %v67, 0
    %vm110 = vcmask 1043456
    %v112 = vsel %vm110, %v101, 0
    %114 = vmatprep.subr.bf16.mxu0 0
    %115 = vmatpush1.bf16.msra.mxu0 0
    %116 = vmatprep.subr.bf16.mxu0 0
    %117 = vmatpush1.bf16.msra.mxu0 0
    %118 = vmatprep.subr.bf16.mxu0 0
    %119 = vmatpush1.bf16.msra.mxu0 0
    %120 = vmatprep.subr.bf16.mxu0 0
    %121 = vmatpush1.bf16.msra.mxu0 %v112
    %122 = vmatprep.subr.bf16.mxu0 0
    %123 = vmatpush1.bf16.msra.mxu0 %v100
    %124 = vmatprep.subr.bf16.mxu0 0
    %125 = vmatpush1.bf16.msra.mxu0 %v99
    %126 = vmatprep.subr.bf16.mxu0 0
    %127 = vmatpush1.bf16.msra.mxu0 %v98
    %128 = vmatprep.subr.bf16.mxu0 0
    %129 = vmatpush1.bf16.msra.mxu0 %v97
    %130 = vmatprep.subr.bf16.mxu0 0
    %131 = vmatpush2.bf16.msra.mxu0 0
    %132 = vmatprep.subr.bf16.mxu0 0
    %133 = vmatpush2.bf16.msra.mxu0 0
    %134 = vmatprep.subr.bf16.mxu0 0
    %135 = vmatpush2.bf16.msra.mxu0 0
    %136 = vmatprep.subr.bf16.mxu0 0
    %137 = vmatpush2.bf16.msra.mxu0 0
    %138 = vmatprep.subr.bf16.mxu0 0
    %139 = vmatpush2.bf16.msra.mxu0 0
    %140 = vmatprep.subr.bf16.mxu0 0
    %141 = vmatpush2.bf16.msra.mxu0 0
    %142 = vmatprep.subr.bf16.mxu0 0
    %143 = vmatpush2.bf16.msra.mxu0 0
    %144 = vmatprep.subr.bf16.mxu0 0
    %145 = vmatpush2.bf16.msra.mxu0 0
    %146 = vmatprep.mubr.bf16.mxu0 0
    %147 = vmatmul.mubr.bf16.gmra.mxu0 %v108
    %v148 = vpop.f32.mrf.mxu0
    %v149 = vadd.f32 0.0, %v148
    %v150 = vpop.f32.mrf.mxu0
    %v151 = vpop.f32.mrf.mxu0
    %v152 = vpop.f32.mrf.mxu0
    %153 = vdwg.mxu0
    %v156 = vunpack.c.l.b16 %v68
    %v157 = vunpack.c.l.b16 %v69
    %v158 = vpack.c.b16 %v157, %v156
    %vm160 = vcmask 130048
    %v162 = vsel %vm160, %v65, 0
    %164 = vmatprep.subr.bf16.mxu0 0
    %165 = vmatpush1.bf16.msra.mxu0 0
    %166 = vmatprep.subr.bf16.mxu0 0
    %167 = vmatpush1.bf16.msra.mxu0 0
    %168 = vmatprep.subr.bf16.mxu0 0
    %169 = vmatpush1.bf16.msra.mxu0 0
    %170 = vmatprep.subr.bf16.mxu0 0
    %171 = vmatpush1.bf16.msra.mxu0 0
    %172 = vmatprep.subr.bf16.mxu0 0
    %173 = vmatpush1.bf16.msra.mxu0 0
    %174 = vmatprep.subr.bf16.mxu0 0
    %175 = vmatpush1.bf16.msra.mxu0 0
    %176 = vmatprep.subr.bf16.mxu0 0
    %177 = vmatpush1.bf16.msra.mxu0 0
    %178 = vmatprep.subr.bf16.mxu0 0
    %179 = vmatpush1.bf16.msra.mxu0 %v158
    %180 = vmatprep.subr.bf16.mxu0 0
    %181 = vmatpush2.bf16.msra.mxu0 0
    %182 = vmatprep.subr.bf16.mxu0 0
    %183 = vmatpush2.bf16.msra.mxu0 0
    %184 = vmatprep.subr.bf16.mxu0 0
    %185 = vmatpush2.bf16.msra.mxu0 0
    %186 = vmatprep.subr.bf16.mxu0 0
    %187 = vmatpush2.bf16.msra.mxu0 0
    %188 = vmatprep.subr.bf16.mxu0 0
    %189 = vmatpush2.bf16.msra.mxu0 0
    %190 = vmatprep.subr.bf16.mxu0 0
    %191 = vmatpush2.bf16.msra.mxu0 0
    %192 = vmatprep.subr.bf16.mxu0 0
    %193 = vmatpush2.bf16.msra.mxu0 0
    %194 = vmatprep.subr.bf16.mxu0 0
    %195 = vmatpush2.bf16.msra.mxu0 0
    %196 = vmatprep.mubr.bf16.mxu0 0
    %197 = vmatmul.mubr.bf16.gmra.mxu0 %v162
    %v198 = vpop.f32.mrf.mxu0
    %v199 = vadd.f32 %v149, %v198
    %v200 = vpop.f32.mrf.mxu0
    %v201 = vpop.f32.mrf.mxu0
    %v202 = vpop.f32.mrf.mxu0
    %203 = vdwg.mxu0
    %v204 = vld [vmem:[#allocation6] sm:$0x1]
    %v206 = vlaneseq
    %v207 = vshrl.u32 %v206, 7
    %v208 = vsub.s32 0, %v207
    %v209 = vrot.slane %v204, %v208
    %v211 = vadd.f32 %v199, %v209
    %v212 = vmax.f32 %v211, 0.0
    %v213 = vpack.c.bf16 %v212, %v212
    %v214 = vld [vmem:[%s5] sm:$0xf]
    %v215 = vld [vmem:[%s5 + $0x4] sm:$0xf]
    %v216 = vld [vmem:[%s5 + $0x8] sm:$0xf]
    %v217 = vld [vmem:[%s5 + $0xc] sm:$0xf]
    %v218 = vld [vmem:[%s5 + $0x10] sm:$0xf]
    %v219 = vld [vmem:[%s5 + $0x14] sm:$0xf]
    %v220 = vld [vmem:[%s5 + $0x18] sm:$0xf]
    %v221 = vld [vmem:[%s5 + $0x1c] sm:$0xf]
    %v222 = vld [vmem:[%s5 + $0x20] sm:$0xf]
    %v223 = vld [vmem:[%s5 + $0x24] sm:$0xf]
    %v224 = vld [vmem:[%s5 + $0x28] sm:$0xf]
    %v225 = vld [vmem:[%s5 + $0x2c] sm:$0xf]
    %v226 = vld [vmem:[%s5 + $0x30] sm:$0xf]
    %v227 = vld [vmem:[%s5 + $0x34] sm:$0xf]
    %v228 = vld [vmem:[%s5 + $0x38] sm:$0xf]
    %v229 = vld [vmem:[%s5 + $0x3c] sm:$0xf]
    %v230 = vld [vmem:[%s6] sm:$0x1]
    %v232 = vlaneseq
    %v233 = vshrl.u32 %v232, 7
    %v234 = vsub.s32 0, %v233
    %v235 = vrot.slane %v230, %v234
    %v253 = vunpack.c.l.b16 %v214
    %v254 = vunpack.c.l.b16 %v215
    %v255 = vunpack.c.l.b16 %v216
    %v256 = vunpack.c.l.b16 %v217
    %v257 = vunpack.c.l.b16 %v218
    %v258 = vunpack.c.l.b16 %v219
    %v259 = vunpack.c.l.b16 %v220
    %v260 = vunpack.c.l.b16 %v221
    %v261 = vunpack.c.l.b16 %v222
    %v262 = vunpack.c.l.b16 %v223
    %v263 = vunpack.c.l.b16 %v224
    %v264 = vunpack.c.l.b16 %v225
    %v265 = vunpack.c.l.b16 %v226
    %v266 = vunpack.c.l.b16 %v227
    %v267 = vunpack.c.l.b16 %v228
    %v268 = vunpack.c.l.b16 %v229
    %v269 = vpack.c.b16 %v254, %v253
    %v270 = vpack.c.b16 %v256, %v255
    %v271 = vpack.c.b16 %v258, %v257
    %v272 = vpack.c.b16 %v260, %v259
    %v273 = vpack.c.b16 %v262, %v261
    %v274 = vpack.c.b16 %v264, %v263
    %v275 = vpack.c.b16 %v266, %v265
    %v276 = vpack.c.b16 %v268, %v267
    %285 = vmatprep.subr.bf16.mxu0 0
    %286 = vmatpush1.bf16.msra.mxu0 %v276
    %287 = vmatprep.subr.bf16.mxu0 0
    %288 = vmatpush1.bf16.msra.mxu0 %v275
    %289 = vmatprep.subr.bf16.mxu0 0
    %290 = vmatpush1.bf16.msra.mxu0 %v274
    %291 = vmatprep.subr.bf16.mxu0 0
    %292 = vmatpush1.bf16.msra.mxu0 %v273
    %293 = vmatprep.subr.bf16.mxu0 0
    %294 = vmatpush1.bf16.msra.mxu0 %v272
    %295 = vmatprep.subr.bf16.mxu0 0
    %296 = vmatpush1.bf16.msra.mxu0 %v271
    %297 = vmatprep.subr.bf16.mxu0 0
    %298 = vmatpush1.bf16.msra.mxu0 %v270
    %299 = vmatprep.subr.bf16.mxu0 0
    %300 = vmatpush1.bf16.msra.mxu0 %v269
    %301 = vmatprep.subr.bf16.mxu0 0
    %302 = vmatpush2.bf16.msra.mxu0 0
    %303 = vmatprep.subr.bf16.mxu0 0
    %304 = vmatpush2.bf16.msra.mxu0 0
    %305 = vmatprep.subr.bf16.mxu0 0
    %306 = vmatpush2.bf16.msra.mxu0 0
    %307 = vmatprep.subr.bf16.mxu0 0
    %308 = vmatpush2.bf16.msra.mxu0 0
    %309 = vmatprep.subr.bf16.mxu0 0
    %310 = vmatpush2.bf16.msra.mxu0 0
    %311 = vmatprep.subr.bf16.mxu0 0
    %312 = vmatpush2.bf16.msra.mxu0 0
    %313 = vmatprep.subr.bf16.mxu0 0
    %314 = vmatpush2.bf16.msra.mxu0 0
    %315 = vmatprep.subr.bf16.mxu0 0
    %316 = vmatpush2.bf16.msra.mxu0 0
    %317 = vmatprep.mubr.bf16.mxu0 0
    %318 = vmatmul.mubr.bf16.gmra.mxu0 %v213
    %v319 = vpop.f32.mrf.mxu0
    %v320 = vadd.f32 %v235, %v319
    %v321 = vpop.f32.mrf.mxu0
    %v322 = vpop.f32.mrf.mxu0
    %v323 = vpop.f32.mrf.mxu0
    %324 = vdwg.mxu0
    %325 = vst [vmem:[%s7] sm:$0xf] %v320
    // Predicated region
    $region42: #{_lambda_.1} parent=1 // pred_check
      _
    $region43: #{_lambda_.1} parent=1 // pred_check_branch
      %327 = sbr.rel (0) target = $region45
    $region44: #{_lambda_.1} parent=1 // pred_region
      _
    $region45: #{_lambda_.1} parent=1 // pred_fallthru
      _
    // Predicated region
    $region46: #{_lambda_.1} parent=1 // pred_check
      _
    $region47: #{_lambda_.1} parent=1 // pred_check_branch
      %329 = sbr.rel (0) target = $region49
    $region48: #{_lambda_.1} parent=1 // pred_region
      _
    $region49: #{_lambda_.1} parent=1 // pred_fallthru
      _
    %330 = vsyncpa [#allocation3], 1
    %331 = vsyncpa [#allocation5], 1

</llo_original>
